<compile_context>
chip_gen: v5e
topology: v5e:2x2
jax: 0.10.0
libtpu: 0.0.40
codegen_flags: <defaults>
</compile_context>

<pallas_src>
import numpy as np
import jax
import jax.numpy as jnp
from jax.experimental import pallas as pl
from jax.experimental.pallas import tpu as pltpu


def _make_fnn2_kernel(tanh_dtype):
    def kernel(x_ref, w1_ref, b1_ref, w2a_ref, w4a_ref, o_ref):
        # x:  (D_in, TN)   batch on the lane axis
        # w1: (H, D_in)    b1: (H, 1)
        # w2a:(H, H+8)     = [s*w2 | s*b2 | 0...]
        # w4a:(D_out, H+8) = [s*w4 | s*b4 | 0...]
        # o:  (D_out, TN)
        x = x_ref[...]
        w1 = w1_ref[...]
        d_in = x.shape[0]
        tn = x.shape[1]

        # Layer 1 on the VPU: K = D_in (tiny) -> static-unrolled broadcast
        # FMAs, no MXU push/pop round-trip on the critical path.
        z1 = b1_ref[...]                       # (H, 1), broadcasts over lanes
        for d in range(d_in):                  # D_in is static
            z1 = z1 + w1[:, d:d + 1] * x[d:d + 1, :]
        y1 = jnp.tanh(z1.astype(tanh_dtype)).astype(jnp.float32)   # (H, TN)

        # 8 ones rows (sublane-aligned) feed the bias columns of w2a/w4a.
        ones8 = jnp.ones((8, tn), jnp.float32)

        # Layer 2 on the MXU: (H, H+8) @ (H+8, TN); bias folded into K.
        y1a = jnp.concatenate([y1, ones8], axis=0)        # (H+8, TN)
        z2 = jnp.dot(w2a_ref[...], y1a, preferred_element_type=jnp.float32)
        y2 = jnp.tanh(z2.astype(tanh_dtype)).astype(jnp.float32)   # (H, TN)

        # Layer 4 on the MXU: (D_out, H+8) @ (H+8, TN); bias folded into K.
        y2a = jnp.concatenate([y2, ones8], axis=0)        # (H+8, TN)
        z4 = jnp.dot(w4a_ref[...], y2a, preferred_element_type=jnp.float32)
        o_ref[...] = z4.astype(o_ref.dtype)

    return kernel


def _round_up(n, m):
    return ((n + m - 1) // m) * m


def fnn2_forward(x, prep, *, tile_n=None, tanh_dtype=jnp.float32):
    """x: (N, D_in) f32 -> (N, D_out) f32.

    `prep` holds scale-folded / bias-augmented parameters from
    `prepare_params`: w1 (H, D_in), b1 (H, 1), w2a (H, H+8), w4a (D_out, H+8).
    `tanh_dtype=jnp.bfloat16` enables the faster (v6e/v7x) activation path at
    ~1e-3 relative error; default f32 matches the reference to 1e-5.
    """
    N, D_in = x.shape
    H = prep["w1"].shape[0]
    D_out = prep["w4a"].shape[0]

    n_pad128 = _round_up(N, 128)
    if tile_n is None:
        # >= 2 grid steps whenever the padded batch allows it (v7x has two
        # TensorCores and shards "parallel" grid axes across them), with
        # tiles as large as possible to amortize the ~0.35 us/step overhead.
        # Cap at 8192 lanes/step: keeps the per-step VMEM footprint (five-ish
        # (32, tile_n) f32 temporaries + double-buffered x/out tiles, ~6 MiB)
        # inside v5e's 16 MiB scoped-VMEM default and far under v7x's 64 MiB.
        if n_pad128 >= 256:
            tile_n = min(8192, _round_up(n_pad128 // 2, 128))
        else:
            tile_n = n_pad128
    n_pad = _round_up(N, tile_n)

    # Single fused pad+transpose in the wrapper (no zeros + dynamic-update
    # slice pass); padded columns are garbage-free zeros and are dropped by
    # the final [:, :N] slice anyway since all compute is per-column.
    xt = jnp.pad(x.T, ((0, 0), (0, n_pad - N)))

    const = lambda i: (0, 0)               # resident weights
    cost = pl.CostEstimate(
        flops=2 * n_pad * (D_in * H + (H + 8) * H + (H + 8) * D_out),
        transcendentals=2 * n_pad * H,
        bytes_accessed=4 * n_pad * (D_in + D_out),
    )

    out_t = pl.pallas_call(
        _make_fnn2_kernel(tanh_dtype),
        out_shape=jax.ShapeDtypeStruct((D_out, n_pad), jnp.float32),
        grid=(n_pad // tile_n,),
        in_specs=[
            pl.BlockSpec((D_in, tile_n), lambda i: (0, i)),   # x tile (lane walk)
            pl.BlockSpec((H, D_in), const),                   # w1
            pl.BlockSpec((H, 1), const),                      # b1
            pl.BlockSpec((H, H + 8), const),                  # w2 | b2 | 0
            pl.BlockSpec((D_out, H + 8), const),              # w4 | b4 | 0
        ],
        out_specs=pl.BlockSpec((D_out, tile_n), lambda i: (0, i)),
        compiler_params=pltpu.CompilerParams(
            dimension_semantics=("parallel",)),
        cost_estimate=cost,
    )(xt, prep["w1"], prep["b1"], prep["w2a"], prep["w4a"])

    return out_t[:, :N].T


def init_params(key, D_in, H, D_out):
    """Deterministic init mirroring the PyTorch normal_ inits.
    Weights in torch (out, in) layout; biases as (out, 1) columns."""
    k = jax.random.split(key, 8)
    return {
        "w1": jax.random.normal(k[0], (H, D_in), jnp.float32) * np.sqrt(2.0 / (D_in + H)),
        "b1": jax.random.normal(k[1], (H, 1), jnp.float32),
        "w2": jax.random.normal(k[2], (H, H), jnp.float32) * np.sqrt(2.0 / (H + H)),
        "b2": jax.random.normal(k[3], (H, 1), jnp.float32),
        # linear3 exists in __init__ but is unused in forward; init it anyway
        # for key-consumption parity with the module.
        "w3": jax.random.normal(k[4], (H, H), jnp.float32) * np.sqrt(2.0 / (H + H)),
        "b3": jax.random.normal(k[5], (H, 1), jnp.float32),
        "w4": jax.random.normal(k[6], (D_out, H), jnp.float32) * np.sqrt(2.0 / (H + D_out)),
        "b4": jax.random.normal(k[7], (D_out, 1), jnp.float32),
    }


def prepare_params(params, scale):
    """One-time parameter transform:
      * fold s = n*a1 into weights/biases (s*(xW+b) == x(sW)+(sb));
      * augment layer-2/4 weights with the bias as column H plus 7 zero
        columns (8-sublane alignment) so the kernel folds the bias adds into
        the MXU matmuls via appended ones rows.
    """
    s = jnp.float32(scale)
    H = params["w1"].shape[0]
    D_out = params["w4"].shape[0]
    w2a = jnp.concatenate(
        [s * params["w2"], s * params["b2"], jnp.zeros((H, 7), jnp.float32)], axis=1)
    w4a = jnp.concatenate(
        [s * params["w4"], s * params["b4"], jnp.zeros((D_out, 7), jnp.float32)], axis=1)
    return {
        "w1": s * params["w1"],
        "b1": s * params["b1"],
        "w2a": w2a,
        "w4a": w4a,
    }


def fnn2_reference(x, params, scale):
    """Pure-JAX reference matching the PyTorch forward."""
    s = scale
    y1 = jnp.tanh(s * (x @ params["w1"].T + params["b1"].T))
    y2 = jnp.tanh(s * (y1 @ params["w2"].T + params["b2"].T))
    return s * (y2 @ params["w4"].T + params["b4"].T)


if __name__ == "__main__":
    # Small shapes consistent with the DCEM usage (2-D coords in, 2-D
    # displacements out, H=32); N chosen so the default tile picks a 2-step
    # batch grid (2-TC sharding path exercised).
    N, D_in, H, D_out = 1024, 2, 32, 2

    key = jax.random.PRNGKey(0)
    kp, kx = jax.random.split(key)
    params = init_params(kp, D_in, H, D_out)
    x = jax.random.normal(kx, (N, D_in), jnp.float32)

    # Reproduce n = 1/a1, scale = n * a1 in float32 (a1 = 0.1).
    a1 = jnp.float32(0.1)
    scale = (jnp.float32(1.0) / a1) * a1

    prep = prepare_params(params, scale)
    out = jax.block_until_ready(fnn2_forward(x, prep))   # f32 path, default tile

    ref = fnn2_reference(x, params, scale)
    np.testing.assert_allclose(np.asarray(out), np.asarray(ref),
                               rtol=1e-5, atol=1e-5)

    print("KERNEL_OK")
</pallas_src>

<mosaic_0001>
module attributes {stable_mosaic.version = 11 : i64} {
  func.func @kernel(%arg0: i32, %arg1: memref<2x512xf32, #tpu.memory_space<vmem>>, %arg2: memref<32x2xf32, #tpu.memory_space<vmem>>, %arg3: memref<32x1xf32, #tpu.memory_space<vmem>>, %arg4: memref<32x40xf32, #tpu.memory_space<vmem>>, %arg5: memref<2x40xf32, #tpu.memory_space<vmem>>, %arg6: memref<2x512xf32, #tpu.memory_space<vmem>>) attributes {dimension_semantics = [#tpu.dimension_semantics<parallel>], iteration_bounds = array<i64: 2>, scalar_prefetch = 0 : i64, scratch_operands = 0 : i64, tpu.core_type = #tpu.core_type<tc>, window_params = [{transform_indices = @transform_0, window_bounds = array<i64: 2, 512>}, {pipeline_mode = #tpu.pipeline_mode<synchronous>, transform_indices = @transform_1, window_bounds = array<i64: 32, 2>}, {pipeline_mode = #tpu.pipeline_mode<synchronous>, transform_indices = @transform_2, window_bounds = array<i64: 32, 1>}, {pipeline_mode = #tpu.pipeline_mode<synchronous>, transform_indices = @transform_3, window_bounds = array<i64: 32, 40>}, {pipeline_mode = #tpu.pipeline_mode<synchronous>, transform_indices = @transform_4, window_bounds = array<i64: 2, 40>}, {transform_indices = @transform_5, window_bounds = array<i64: 2, 512>}]} {
    %c0 = arith.constant 0 : index
    %c0_0 = arith.constant 0 : index
    %0 = vector.load %arg1[%c0, %c0_0] : memref<2x512xf32, #tpu.memory_space<vmem>>, vector<2x512xf32>
    %c0_1 = arith.constant 0 : index
    %c0_2 = arith.constant 0 : index
    %1 = vector.load %arg2[%c0_1, %c0_2] : memref<32x2xf32, #tpu.memory_space<vmem>>, vector<32x2xf32>
    %c0_3 = arith.constant 0 : index
    %c0_4 = arith.constant 0 : index
    %2 = vector.load %arg3[%c0_3, %c0_4] : memref<32x1xf32, #tpu.memory_space<vmem>>, vector<32x1xf32>
    %3 = vector.extract_strided_slice %1 {offsets = [0, 0], sizes = [32, 1], strides = [1, 1]} : vector<32x2xf32> to vector<32x1xf32>
    %4 = vector.extract_strided_slice %0 {offsets = [0, 0], sizes = [1, 512], strides = [1, 1]} : vector<2x512xf32> to vector<1x512xf32>
    %5 = vector.broadcast %3 : vector<32x1xf32> to vector<32x512xf32>
    %6 = vector.broadcast %4 : vector<1x512xf32> to vector<32x512xf32>
    %7 = arith.mulf %5, %6 : vector<32x512xf32>
    %8 = vector.broadcast %2 : vector<32x1xf32> to vector<32x512xf32>
    %9 = arith.addf %8, %7 : vector<32x512xf32>
    %10 = vector.extract_strided_slice %1 {offsets = [0, 1], sizes = [32, 1], strides = [1, 1]} : vector<32x2xf32> to vector<32x1xf32>
    %11 = vector.extract_strided_slice %0 {offsets = [1, 0], sizes = [1, 512], strides = [1, 1]} : vector<2x512xf32> to vector<1x512xf32>
    %12 = vector.broadcast %10 : vector<32x1xf32> to vector<32x512xf32>
    %13 = vector.broadcast %11 : vector<1x512xf32> to vector<32x512xf32>
    %14 = arith.mulf %12, %13 : vector<32x512xf32>
    %15 = arith.addf %9, %14 : vector<32x512xf32>
    %16 = math.tanh %15 : vector<32x512xf32>
    %cst = arith.constant 1.000000e+00 : f32
    %17 = vector.broadcast %cst : f32 to vector<8x512xf32>
    %18 = tpu.concatenate %16, %17 in 0 : vector<32x512xf32>, vector<8x512xf32> -> vector<40x512xf32>
    %c0_5 = arith.constant 0 : index
    %c0_6 = arith.constant 0 : index
    %19 = vector.load %arg4[%c0_5, %c0_6] : memref<32x40xf32, #tpu.memory_space<vmem>>, vector<32x40xf32>
    %cst_7 = arith.constant dense<0.000000e+00> : vector<32x512xf32>
    %20 = tpu.matmul %19, %18, %cst_7 {dimension_numbers = #tpu.dot_dimension_numbers<[1], [0], [0], [1], [0, 0, 1, 1], [], []>} : vector<32x40xf32>, vector<40x512xf32>, vector<32x512xf32> -> vector<32x512xf32>
    %21 = math.tanh %20 : vector<32x512xf32>
    %22 = tpu.concatenate %21, %17 in 0 : vector<32x512xf32>, vector<8x512xf32> -> vector<40x512xf32>
    %c0_8 = arith.constant 0 : index
    %c0_9 = arith.constant 0 : index
    %23 = vector.load %arg5[%c0_8, %c0_9] : memref<2x40xf32, #tpu.memory_space<vmem>>, vector<2x40xf32>
    %cst_10 = arith.constant dense<0.000000e+00> : vector<2x512xf32>
    %24 = tpu.matmul %23, %22, %cst_10 {dimension_numbers = #tpu.dot_dimension_numbers<[1], [0], [0], [1], [0, 0, 1, 1], [], []>} : vector<2x40xf32>, vector<40x512xf32>, vector<2x512xf32> -> vector<2x512xf32>
    %c0_11 = arith.constant 0 : index
    %c0_12 = arith.constant 0 : index
    %25 = vector.load %arg6[%c0_11, %c0_12] : memref<2x512xf32, #tpu.memory_space<vmem>>, vector<2x512xf32>
    tpu.vector_store %arg6[%c0_11, %c0_12], %24 {strides = array<i32>} : memref<2x512xf32, #tpu.memory_space<vmem>>, vector<2x512xf32>,
    return
  }
  func.func @transform_0(%arg0: i32) -> (i32, i32) {
    %c0_i32 = arith.constant 0 : i32
    %c0_i32_0 = arith.constant 0 : i32
    return %c0_i32, %arg0 : i32, i32
  }
  func.func @transform_1(%arg0: i32) -> (i32, i32) {
    %c0_i32 = arith.constant 0 : i32
    %c0_i32_0 = arith.constant 0 : i32
    %c0_i32_1 = arith.constant 0 : i32
    return %c0_i32, %c0_i32_0 : i32, i32
  }
  func.func @transform_2(%arg0: i32) -> (i32, i32) {
    %c0_i32 = arith.constant 0 : i32
    %c0_i32_0 = arith.constant 0 : i32
    %c0_i32_1 = arith.constant 0 : i32
    return %c0_i32, %c0_i32_0 : i32, i32
  }
  func.func @transform_3(%arg0: i32) -> (i32, i32) {
    %c0_i32 = arith.constant 0 : i32
    %c0_i32_0 = arith.constant 0 : i32
    %c0_i32_1 = arith.constant 0 : i32
    return %c0_i32, %c0_i32_0 : i32, i32
  }
  func.func @transform_4(%arg0: i32) -> (i32, i32) {
    %c0_i32 = arith.constant 0 : i32
    %c0_i32_0 = arith.constant 0 : i32
    %c0_i32_1 = arith.constant 0 : i32
    return %c0_i32, %c0_i32_0 : i32, i32
  }
  func.func @transform_5(%arg0: i32) -> (i32, i32) {
    %c0_i32 = arith.constant 0 : i32
    %c0_i32_0 = arith.constant 0 : i32
    return %c0_i32, %arg0 : i32, i32
  }
}

</mosaic_0001>

<llo_original>
// kernel: tpu_custom_call.1
$region0: #{tpu_custom_call.1}
  #allocation0 [shape = 'u32[]', space=smem, size = 0x4, offset = 0x4, fixed_abs, tag = 'smem constant byte address 0x4 - core index']
  #allocation1 [shape = 'u32[72,128]{1,0:T(1,128)}', space=vmem, size = 0x9000, scoped, tag = 'internal scratch']
  %s0 = inlined_call_operand.vmem [shape: f32[2,1024], index: 0, kind: input, shape index: {}]
  %s1 = inlined_call_operand.vmem [shape: f32[32,2], index: 1, kind: input, shape index: {}]
  %s2 = inlined_call_operand.vmem [shape: f32[32,1], index: 2, kind: input, shape index: {}]
  %s3 = inlined_call_operand.vmem [shape: f32[32,40], index: 3, kind: input, shape index: {}]
  %s4 = inlined_call_operand.vmem [shape: f32[2,40], index: 4, kind: input, shape index: {}]
  %s5 = inlined_call_operand.hbm [shape: f32[2,1024], index: 5, kind: output, shape index: {}]
  %s6 = sld [smem:[#allocation0]]
  $region53: #{tpu_custom_call.1} parent=0
    _
  %s8 = ssub.s32 1, %s6
  %s9 = scalar_select 0, %s8, %s6
  $region1: #{tpu_custom_call.1} parent=0
    #allocation2 [shape = 'u8[8192]{0}', space=vmem, size = 0x2000, scoped, tag = 'output window, operand 0']
    #allocation3 [shape = 's32[2]{0}', space=sflag, size = 0x8, scoped, tag = 'scoped memory for tpu_custom_call.1']
    %10 = vsyncpa [#allocation3], 0
    %s11 = scalar_lea.sflag [#allocation3], 1
    %12 = vsyncpa %s11, 0
    loop: start=0, step=1, limit=4
    $region2: #{tpu_custom_call.1} parent=1 // loop_pre_header
      _
    $region3: #{tpu_custom_call.1} parent=1 // loop_header
      %s14 = sphi 0, %s18
      %p15 = scmp.ge.s32.totalorder %s14, 4
      %s24 = sphi 0, %s26
      %s27 = sphi 0, %s24
      %s28 = sphi 0, %s27
      %s44 = sphi 0, %s28
      %s48 = sphi 0, %s48
      %s50 = sphi 0, %s48
      %s51 = sphi 0, %s50
      %s65 = sphi 0, %s51
      %s69 = sphi 0, %s69
      %s71 = sphi 0, %s69
      %s72 = sphi 0, %s71
      %s86 = sphi 0, %s72
      %s90 = sphi 0, %s90
      %s92 = sphi 0, %s90
      %s93 = sphi 0, %s92
      %s107 = sphi 0, %s93
      %s111 = sphi 0, %s111
      %s113 = sphi 0, %s111
      %s114 = sphi 0, %s113
      %s128 = sphi 0, %s114
      %s134 = sphi 0, %s136
      %s137 = sphi 0, %s134
      %s138 = sphi 0, %s137
      %s154 = sphi 0, %s138
    $region4: #{tpu_custom_call.1} parent=1 // loop_header_branch
      %17 = sbr.rel (%p15) target = $region8
    $region5: #{tpu_custom_call.1} parent=1 // loop_body
      %s19 = ssub.s32 %s14, 1
      %s20 = ssub.s32 %s14, 2
      %s21 = sadd.s32 %s14, 1
      %s22 = ssub.s32 %s14, %s21
      %p23 = scmp.eq.s32.totalorder %s22, 0
      %s25 = sadd.s32 %s24, 1
      %s26 = scalar_select %p23, %s24, %s25
      %p29 = pneg %p23
      %p30 = scmp.eq.s32.totalorder %s14, 1
      %p31 = por %p29, %p30
      %p32 = scmp.ne.s32.totalorder %s24, %s27
      %p33 = scmp.eq.s32.totalorder %s14, 0
      %p34 = por %p32, %p33
      %p35 = scmp.ne.s32.totalorder %s24, %s27
      %p36 = scmp.eq.s32.totalorder %s19, 1
      %p37 = por %p35, %p36
      %p38 = scmp.ne.s32.totalorder %s27, %s28
      %p39 = scmp.eq.s32.totalorder %s19, 0
      %p40 = por %p38, %p39
      %p41 = scmp.ne.s32.totalorder %s27, %s28
      %p42 = scmp.eq.s32.totalorder %s20, 1
      %p43 = por %p41, %p42
      %p45 = scmp.ne.s32.totalorder %s28, %s44
      %p46 = scmp.eq.s32.totalorder %s20, 0
      %p47 = por %p45, %p46
      %s49 = sadd.s32 %s48, 1
      %p52 = scmp.eq.s32.totalorder %s14, 1
      %p53 = scmp.ne.s32.totalorder %s48, %s50
      %p54 = scmp.eq.s32.totalorder %s14, 0
      %p55 = por %p53, %p54
      %p56 = scmp.ne.s32.totalorder %s48, %s50
      %p57 = scmp.eq.s32.totalorder %s19, 1
      %p58 = por %p56, %p57
      %p59 = scmp.ne.s32.totalorder %s50, %s51
      %p60 = scmp.eq.s32.totalorder %s19, 0
      %p61 = por %p59, %p60
      %p62 = scmp.ne.s32.totalorder %s50, %s51
      %p63 = scmp.eq.s32.totalorder %s20, 1
      %p64 = por %p62, %p63
      %p66 = scmp.ne.s32.totalorder %s51, %s65
      %p67 = scmp.eq.s32.totalorder %s20, 0
      %p68 = por %p66, %p67
      %s70 = sadd.s32 %s69, 1
      %p73 = scmp.eq.s32.totalorder %s14, 1
      %p74 = scmp.ne.s32.totalorder %s69, %s71
      %p75 = scmp.eq.s32.totalorder %s14, 0
      %p76 = por %p74, %p75
      %p77 = scmp.ne.s32.totalorder %s69, %s71
      %p78 = scmp.eq.s32.totalorder %s19, 1
      %p79 = por %p77, %p78
      %p80 = scmp.ne.s32.totalorder %s71, %s72
      %p81 = scmp.eq.s32.totalorder %s19, 0
      %p82 = por %p80, %p81
      %p83 = scmp.ne.s32.totalorder %s71, %s72
      %p84 = scmp.eq.s32.totalorder %s20, 1
      %p85 = por %p83, %p84
      %p87 = scmp.ne.s32.totalorder %s72, %s86
      %p88 = scmp.eq.s32.totalorder %s20, 0
      %p89 = por %p87, %p88
      %s91 = sadd.s32 %s90, 1
      %p94 = scmp.eq.s32.totalorder %s14, 1
      %p95 = scmp.ne.s32.totalorder %s90, %s92
      %p96 = scmp.eq.s32.totalorder %s14, 0
      %p97 = por %p95, %p96
      %p98 = scmp.ne.s32.totalorder %s90, %s92
      %p99 = scmp.eq.s32.totalorder %s19, 1
      %p100 = por %p98, %p99
      %p101 = scmp.ne.s32.totalorder %s92, %s93
      %p102 = scmp.eq.s32.totalorder %s19, 0
      %p103 = por %p101, %p102
      %p104 = scmp.ne.s32.totalorder %s92, %s93
      %p105 = scmp.eq.s32.totalorder %s20, 1
      %p106 = por %p104, %p105
      %p108 = scmp.ne.s32.totalorder %s93, %s107
      %p109 = scmp.eq.s32.totalorder %s20, 0
      %p110 = por %p108, %p109
      %s112 = sadd.s32 %s111, 1
      %p115 = scmp.eq.s32.totalorder %s14, 1
      %p116 = scmp.ne.s32.totalorder %s111, %s113
      %p117 = scmp.eq.s32.totalorder %s14, 0
      %p118 = por %p116, %p117
      %p119 = scmp.ne.s32.totalorder %s111, %s113
      %p120 = scmp.eq.s32.totalorder %s19, 1
      %p121 = por %p119, %p120
      %p122 = scmp.ne.s32.totalorder %s113, %s114
      %p123 = scmp.eq.s32.totalorder %s19, 0
      %p124 = por %p122, %p123
      %p125 = scmp.ne.s32.totalorder %s113, %s114
      %p126 = scmp.eq.s32.totalorder %s20, 1
      %p127 = por %p125, %p126
      %p129 = scmp.ne.s32.totalorder %s114, %s128
      %p130 = scmp.eq.s32.totalorder %s20, 0
      %p131 = por %p129, %p130
      %s132 = ssub.s32 %s14, %s21
      %p133 = scmp.eq.s32.totalorder %s132, 0
      %s135 = sadd.s32 %s134, 1
      %s136 = scalar_select %p133, %s134, %s135
      %p139 = pneg %p133
      %p140 = scmp.eq.s32.totalorder %s14, 1
      %p141 = por %p139, %p140
      %p142 = scmp.ne.s32.totalorder %s134, %s137
      %p143 = scmp.eq.s32.totalorder %s14, 0
      %p144 = por %p142, %p143
      %p145 = scmp.ne.s32.totalorder %s134, %s137
      %p146 = scmp.eq.s32.totalorder %s19, 1
      %p147 = por %p145, %p146
      %p148 = scmp.ne.s32.totalorder %s137, %s138
      %p149 = scmp.eq.s32.totalorder %s19, 0
      %p150 = por %p148, %p149
      %p151 = scmp.ne.s32.totalorder %s137, %s138
      %p152 = scmp.eq.s32.totalorder %s20, 1
      %p153 = por %p151, %p152
      %p155 = scmp.ne.s32.totalorder %s138, %s154
      %p156 = scmp.eq.s32.totalorder %s20, 0
      %p157 = por %p155, %p156
      %p158 = scmp.le.s32.totalorder 1, %s14
      %p159 = scmp.lt.s32.totalorder %s14, 3
      %p160 = pnand %p158, %p159
      %p161 = pneg %p160
      // Predicated region
      $region9: #{tpu_custom_call.1} parent=5 // pred_check
        _
      $region10: #{tpu_custom_call.1} parent=5 // pred_check_branch
        %163 = sbr.rel (%p160) target = $region12
      $region11: #{tpu_custom_call.1} parent=5 // pred_region
        %s164 = ssub.s32 %s14, 1
        // Predicated region
        $region13: #{tpu_custom_call.1} parent=11 // pred_check
          %p165 = pneg %p61
        $region14: #{tpu_custom_call.1} parent=11 // pred_check_branch
          %167 = sbr.rel (%p165) target = $region16
        $region15: #{tpu_custom_call.1} parent=11 // pred_region
          _
        $region16: #{tpu_custom_call.1} parent=11 // pred_fallthru
          _
        // Predicated region
        $region17: #{tpu_custom_call.1} parent=11 // pred_check
          %p168 = pneg %p82
        $region18: #{tpu_custom_call.1} parent=11 // pred_check_branch
          %170 = sbr.rel (%p168) target = $region20
        $region19: #{tpu_custom_call.1} parent=11 // pred_region
          _
        $region20: #{tpu_custom_call.1} parent=11 // pred_fallthru
          _
        // Predicated region
        $region21: #{tpu_custom_call.1} parent=11 // pred_check
          %p171 = pneg %p103
        $region22: #{tpu_custom_call.1} parent=11 // pred_check_branch
          %173 = sbr.rel (%p171) target = $region24
        $region23: #{tpu_custom_call.1} parent=11 // pred_region
          _
        $region24: #{tpu_custom_call.1} parent=11 // pred_fallthru
          _
        // Predicated region
        $region25: #{tpu_custom_call.1} parent=11 // pred_check
          %p174 = pneg %p124
        $region26: #{tpu_custom_call.1} parent=11 // pred_check_branch
          %176 = sbr.rel (%p174) target = $region28
        $region27: #{tpu_custom_call.1} parent=11 // pred_region
          _
        $region28: #{tpu_custom_call.1} parent=11 // pred_fallthru
          _
      $region12: #{tpu_custom_call.1} parent=5 // pred_fallthru
        _
      %p177 = scmp.lt.s32.totalorder %s14, 2
      // Predicated region
      $region29: #{tpu_custom_call.1} parent=5 // pred_check
        %p178 = pneg %p177
      $region30: #{tpu_custom_call.1} parent=5 // pred_check_branch
        %180 = sbr.rel (%p178) target = $region32
      $region31: #{tpu_custom_call.1} parent=5 // pred_region
        // Predicated region
        $region33: #{tpu_custom_call.1} parent=31 // pred_check
          %p181 = pneg %p34
        $region34: #{tpu_custom_call.1} parent=31 // pred_check_branch
          %183 = sbr.rel (%p181) target = $region36
        $region35: #{tpu_custom_call.1} parent=31 // pred_region
          %s184 = smul.u32 4, %s14
          %p185 = scmp.lt.s32.totalorder %s184, 7
          %s186 = scalar_select %p185, %s184, 7
          %s187 = smul.addr %s186, 2
          %s188 = scalar_lea.vmem %s0, %s187
          %s189 = smul.u32 4, %s14
        $region36: #{tpu_custom_call.1} parent=31 // pred_fallthru
          _
      $region32: #{tpu_custom_call.1} parent=5 // pred_fallthru
        _
      %p190 = scmp.le.s32.totalorder 1, %s14
      %p191 = scmp.lt.s32.totalorder %s14, 3
      %p192 = pnand %p190, %p191
      %p193 = pneg %p192
      // Predicated region
      $region37: #{tpu_custom_call.1} parent=5 // pred_check
        _
      $region38: #{tpu_custom_call.1} parent=5 // pred_check_branch
        %195 = sbr.rel (%p192) target = $region40
      $region39: #{tpu_custom_call.1} parent=5 // pred_region
        %s196 = ssub.s32 %s14, 1
        %s197 = smul.u32 4, %s19
        %p198 = scmp.lt.s32.totalorder %s197, 7
        %s199 = scalar_select %p198, %s197, 7
        %s200 = smul.addr %s199, 2
        %s201 = scalar_lea.vmem %s0, %s200
        %p202 = pneg %p40
        %p203 = pneg %p37
        %p204 = pneg %p61
        %p205 = pneg %p58
        %p206 = pneg %p82
        %p207 = pneg %p79
        %p208 = pneg %p103
        %p209 = pneg %p100
        %p210 = pneg %p124
        %p211 = pneg %p121
        %p212 = pneg %p150
        %p213 = pneg %p147
        %s214 = sand.u32 %s137, 1
        %s215 = scalar_lea.sflag [#allocation3], %s214
        %s216 = sand.u32 %s137, 1
        %s217 = smul.addr %s216, 8
        %s218 = scalar_lea.vmem [#allocation2], %s217
        %s219 = smul.u32 4, %s19
        %p220 = scmp.lt.s32.totalorder %s219, 7
        %s221 = scalar_select %p220, %s219, 7
        %s222 = smul.addr %s221, 2
        %s223 = scalar_lea.vmem %s0, %s222
        %s224 = smul.u32 4, %s19
        %s225 = smul.u32 4, %s19
        %v226 = vld [vmem:[%s223] sm:$0xff]
        %v227 = vld [vmem:[%s1] sm:$0xff]
        %v228 = vld [vmem:[%s1 + $0x8] sm:$0xff]
        %v229 = vld [vmem:[%s1 + $0x10] sm:$0xff]
        %v230 = vld [vmem:[%s1 + $0x18] sm:$0xff]
        %v231 = vld [vmem:[%s2] sm:$0xff]
        %v232 = vld [vmem:[%s2 + $0x8] sm:$0xff]
        %v233 = vld [vmem:[%s2 + $0x10] sm:$0xff]
        %v234 = vld [vmem:[%s2 + $0x18] sm:$0xff]
        %236 = vset.pattern.permute.xlu0 0
        %237 = vperm.xlu0 %236, %v227
        %v238 = vpop.permute.xlu0 %237
        %241 = vset.pattern.permute.xlu0 0
        %242 = vperm.xlu0 %241, %v228
        %v243 = vpop.permute.xlu0 %242
        %246 = vset.pattern.permute.xlu0 0
        %247 = vperm.xlu0 %246, %v229
        %v248 = vpop.permute.xlu0 %247
        %251 = vset.pattern.permute.xlu0 0
        %252 = vperm.xlu0 %251, %v230
        %v253 = vpop.permute.xlu0 %252
        %v256 = vperm.slane %v226, 0
        %v257 = vperm.slane %v226, 2
        %v258 = vperm.slane %v226, 4
        %v259 = vperm.slane %v226, 6
        %v264 = vperm.slane %v256, 0
        %v265 = vperm.slane %v257, 0
        %v266 = vperm.slane %v258, 0
        %v267 = vperm.slane %v259, 0
        %v268 = vmul.f32 %v238, %v264
        %v269 = vmul.f32 %v238, %v265
        %v270 = vmul.f32 %v238, %v266
        %v271 = vmul.f32 %v238, %v267
        %v272 = vmul.f32 %v243, %v264
        %v273 = vmul.f32 %v243, %v265
        %v274 = vmul.f32 %v243, %v266
        %v275 = vmul.f32 %v243, %v267
        %v276 = vmul.f32 %v248, %v264
        %v277 = vmul.f32 %v248, %v265
        %v278 = vmul.f32 %v248, %v266
        %v279 = vmul.f32 %v248, %v267
        %v280 = vmul.f32 %v253, %v264
        %v281 = vmul.f32 %v253, %v265
        %v282 = vmul.f32 %v253, %v266
        %v283 = vmul.f32 %v253, %v267
        %285 = vset.pattern.permute.xlu0 0
        %286 = vperm.xlu0 %285, %v231
        %v287 = vpop.permute.xlu0 %286
        %290 = vset.pattern.permute.xlu0 0
        %291 = vperm.xlu0 %290, %v232
        %v292 = vpop.permute.xlu0 %291
        %295 = vset.pattern.permute.xlu0 0
        %296 = vperm.xlu0 %295, %v233
        %v297 = vpop.permute.xlu0 %296
        %300 = vset.pattern.permute.xlu0 0
        %301 = vperm.xlu0 %300, %v234
        %v302 = vpop.permute.xlu0 %301
        %v304 = vadd.f32 %v287, %v268
        %v305 = vadd.f32 %v287, %v269
        %v306 = vadd.f32 %v287, %v270
        %v307 = vadd.f32 %v287, %v271
        %v308 = vadd.f32 %v292, %v272
        %v309 = vadd.f32 %v292, %v273
        %v310 = vadd.f32 %v292, %v274
        %v311 = vadd.f32 %v292, %v275
        %v312 = vadd.f32 %v297, %v276
        %v313 = vadd.f32 %v297, %v277
        %v314 = vadd.f32 %v297, %v278
        %v315 = vadd.f32 %v297, %v279
        %v316 = vadd.f32 %v302, %v280
        %v317 = vadd.f32 %v302, %v281
        %v318 = vadd.f32 %v302, %v282
        %v319 = vadd.f32 %v302, %v283
        %320 = vset.pattern.permute.xlu0 1
        %321 = vperm.xlu0 %320, %v227
        %v322 = vpop.permute.xlu0 %321
        %324 = vset.pattern.permute.xlu0 1
        %325 = vperm.xlu0 %324, %v228
        %v326 = vpop.permute.xlu0 %325
        %328 = vset.pattern.permute.xlu0 1
        %329 = vperm.xlu0 %328, %v229
        %v330 = vpop.permute.xlu0 %329
        %332 = vset.pattern.permute.xlu0 1
        %333 = vperm.xlu0 %332, %v230
        %v334 = vpop.permute.xlu0 %333
        %v336 = vperm.slane %v226, 1
        %v337 = vperm.slane %v226, 3
        %v338 = vperm.slane %v226, 5
        %v339 = vperm.slane %v226, 7
        %v344 = vperm.slane %v336, 1
        %v345 = vperm.slane %v337, 1
        %v346 = vperm.slane %v338, 1
        %v347 = vperm.slane %v339, 1
        %v348 = vmul.f32 %v322, %v344
        %v349 = vmul.f32 %v322, %v345
        %v350 = vmul.f32 %v322, %v346
        %v351 = vmul.f32 %v322, %v347
        %v352 = vmul.f32 %v326, %v344
        %v353 = vmul.f32 %v326, %v345
        %v354 = vmul.f32 %v326, %v346
        %v355 = vmul.f32 %v326, %v347
        %v356 = vmul.f32 %v330, %v344
        %v357 = vmul.f32 %v330, %v345
        %v358 = vmul.f32 %v330, %v346
        %v359 = vmul.f32 %v330, %v347
        %v360 = vmul.f32 %v334, %v344
        %v361 = vmul.f32 %v334, %v345
        %v362 = vmul.f32 %v334, %v346
        %v363 = vmul.f32 %v334, %v347
        %v364 = vadd.f32 %v304, %v348
        %v365 = vadd.f32 %v305, %v349
        %v366 = vadd.f32 %v306, %v350
        %v367 = vadd.f32 %v307, %v351
        %v368 = vadd.f32 %v308, %v352
        %v369 = vadd.f32 %v309, %v353
        %v370 = vadd.f32 %v310, %v354
        %v371 = vadd.f32 %v311, %v355
        %v372 = vadd.f32 %v312, %v356
        %v373 = vadd.f32 %v313, %v357
        %v374 = vadd.f32 %v314, %v358
        %v375 = vadd.f32 %v315, %v359
        %v376 = vadd.f32 %v316, %v360
        %v377 = vadd.f32 %v317, %v361
        %v378 = vadd.f32 %v318, %v362
        %v379 = vadd.f32 %v319, %v363
        %v380 = vtanh.pop %v364
        %v381 = vtanh.pop %v365
        %v382 = vtanh.pop %v366
        %v383 = vtanh.pop %v367
        %v384 = vtanh.pop %v368
        %v385 = vtanh.pop %v369
        %v386 = vtanh.pop %v370
        %v387 = vtanh.pop %v371
        %v388 = vtanh.pop %v372
        %v389 = vtanh.pop %v373
        %v390 = vtanh.pop %v374
        %v391 = vtanh.pop %v375
        %v392 = vtanh.pop %v376
        %v393 = vtanh.pop %v377
        %v394 = vtanh.pop %v378
        %v395 = vtanh.pop %v379
        %v396 = vld [vmem:[%s3] sm:$0xff]
        %v397 = vld [vmem:[%s3 + $0x8] sm:$0xff]
        %v398 = vld [vmem:[%s3 + $0x10] sm:$0xff]
        %v399 = vld [vmem:[%s3 + $0x18] sm:$0xff]
        %vm400 = vcmask 326656
        %v402 = vsel %vm400, %v396, 0
        %v405 = vsel %vm400, %v397, 0
        %v408 = vsel %vm400, %v398, 0
        %v411 = vsel %vm400, %v399, 0
        %413 = vmatpush.msra.mxu0 0.0
        %414 = vmatpush.msra.mxu0 0.0
        %415 = vmatpush.msra.mxu0 0.0
        %416 = vmatpush.msra.mxu0 0.0
        %417 = vmatpush.msra.mxu0 0.0
        %418 = vmatpush.msra.mxu0 0.0
        %419 = vmatpush.msra.mxu0 0.0
        %420 = vmatpush.msra.mxu0 0.0
        %421 = vmatpush.msra.mxu0 0.0
        %422 = vmatpush.msra.mxu0 0.0
        %423 = vmatpush.msra.mxu0 0.0
        %424 = vmatpush.msra.mxu0 1.0
        %425 = vmatpush.msra.mxu0 %v392
        %426 = vmatpush.msra.mxu0 %v388
        %427 = vmatpush.msra.mxu0 %v384
        %428 = vmatpush.msra.mxu0 %v380
        %429 = vmatmul.f32.gmra.mxu0 %v402
        %v430 = vpop.f32.mrf.mxu0
        %v431 = vadd.f32 0.0, %v430
        %432 = vmatmul.f32.gmra.mxu0 %v405
        %v433 = vpop.f32.mrf.mxu0
        %v434 = vadd.f32 0.0, %v433
        %435 = vmatmul.f32.gmra.mxu0 %v408
        %v436 = vpop.f32.mrf.mxu0
        %v437 = vadd.f32 0.0, %v436
        %438 = vmatmul.f32.gmra.mxu0 %v411
        %v439 = vpop.f32.mrf.mxu0
        %v440 = vadd.f32 0.0, %v439
        %441 = vdwg.mxu0
        %442 = vmatpush.msra.mxu0 0.0
        %443 = vmatpush.msra.mxu0 0.0
        %444 = vmatpush.msra.mxu0 0.0
        %445 = vmatpush.msra.mxu0 0.0
        %446 = vmatpush.msra.mxu0 0.0
        %447 = vmatpush.msra.mxu0 0.0
        %448 = vmatpush.msra.mxu0 0.0
        %449 = vmatpush.msra.mxu0 0.0
        %450 = vmatpush.msra.mxu0 0.0
        %451 = vmatpush.msra.mxu0 0.0
        %452 = vmatpush.msra.mxu0 0.0
        %453 = vmatpush.msra.mxu0 1.0
        %454 = vmatpush.msra.mxu0 %v393
        %455 = vmatpush.msra.mxu0 %v389
        %456 = vmatpush.msra.mxu0 %v385
        %457 = vmatpush.msra.mxu0 %v381
        %458 = vmatmul.f32.gmra.mxu0 %v402
        %v459 = vpop.f32.mrf.mxu0
        %v460 = vadd.f32 0.0, %v459
        %461 = vmatmul.f32.gmra.mxu0 %v405
        %v462 = vpop.f32.mrf.mxu0
        %v463 = vadd.f32 0.0, %v462
        %464 = vmatmul.f32.gmra.mxu0 %v408
        %v465 = vpop.f32.mrf.mxu0
        %v466 = vadd.f32 0.0, %v465
        %467 = vmatmul.f32.gmra.mxu0 %v411
        %v468 = vpop.f32.mrf.mxu0
        %v469 = vadd.f32 0.0, %v468
        %470 = vdwg.mxu0
        %471 = vmatpush.msra.mxu0 0.0
        %472 = vmatpush.msra.mxu0 0.0
        %473 = vmatpush.msra.mxu0 0.0
        %474 = vmatpush.msra.mxu0 0.0
        %475 = vmatpush.msra.mxu0 0.0
        %476 = vmatpush.msra.mxu0 0.0
        %477 = vmatpush.msra.mxu0 0.0
        %478 = vmatpush.msra.mxu0 0.0
        %479 = vmatpush.msra.mxu0 0.0
        %480 = vmatpush.msra.mxu0 0.0
        %481 = vmatpush.msra.mxu0 0.0
        %482 = vmatpush.msra.mxu0 1.0
        %483 = vmatpush.msra.mxu0 %v394
        %484 = vmatpush.msra.mxu0 %v390
        %485 = vmatpush.msra.mxu0 %v386
        %486 = vmatpush.msra.mxu0 %v382
        %487 = vmatmul.f32.gmra.mxu0 %v402
        %v488 = vpop.f32.mrf.mxu0
        %v489 = vadd.f32 0.0, %v488
        %490 = vmatmul.f32.gmra.mxu0 %v405
        %v491 = vpop.f32.mrf.mxu0
        %v492 = vadd.f32 0.0, %v491
        %493 = vmatmul.f32.gmra.mxu0 %v408
        %v494 = vpop.f32.mrf.mxu0
        %v495 = vadd.f32 0.0, %v494
        %496 = vmatmul.f32.gmra.mxu0 %v411
        %v497 = vpop.f32.mrf.mxu0
        %v498 = vadd.f32 0.0, %v497
        %499 = vdwg.mxu0
        %500 = vmatpush.msra.mxu0 0.0
        %501 = vmatpush.msra.mxu0 0.0
        %502 = vmatpush.msra.mxu0 0.0
        %503 = vmatpush.msra.mxu0 0.0
        %504 = vmatpush.msra.mxu0 0.0
        %505 = vmatpush.msra.mxu0 0.0
        %506 = vmatpush.msra.mxu0 0.0
        %507 = vmatpush.msra.mxu0 0.0
        %508 = vmatpush.msra.mxu0 0.0
        %509 = vmatpush.msra.mxu0 0.0
        %510 = vmatpush.msra.mxu0 0.0
        %511 = vmatpush.msra.mxu0 1.0
        %512 = vmatpush.msra.mxu0 %v395
        %513 = vmatpush.msra.mxu0 %v391
        %514 = vmatpush.msra.mxu0 %v387
        %515 = vmatpush.msra.mxu0 %v383
        %516 = vmatmul.f32.gmra.mxu0 %v402
        %v517 = vpop.f32.mrf.mxu0
        %v518 = vadd.f32 0.0, %v517
        %519 = vmatmul.f32.gmra.mxu0 %v405
        %v520 = vpop.f32.mrf.mxu0
        %v521 = vadd.f32 0.0, %v520
        %522 = vmatmul.f32.gmra.mxu0 %v408
        %v523 = vpop.f32.mrf.mxu0
        %v524 = vadd.f32 0.0, %v523
        %525 = vmatmul.f32.gmra.mxu0 %v411
        %v526 = vpop.f32.mrf.mxu0
        %v527 = vadd.f32 0.0, %v526
        %528 = vdwg.mxu0
        %v529 = vtanh.pop %v431
        %v530 = vtanh.pop %v460
        %v531 = vtanh.pop %v489
        %v532 = vtanh.pop %v518
        %v533 = vtanh.pop %v434
        %v534 = vtanh.pop %v463
        %v535 = vtanh.pop %v492
        %v536 = vtanh.pop %v521
        %v537 = vtanh.pop %v437
        %v538 = vtanh.pop %v466
        %v539 = vtanh.pop %v495
        %v540 = vtanh.pop %v524
        %v541 = vtanh.pop %v440
        %v542 = vtanh.pop %v469
        %v543 = vtanh.pop %v498
        %v544 = vtanh.pop %v527
        %v545 = vld [vmem:[%s4] sm:$0x3]
        %v547 = vsel %vm400, %v545, 0
        %549 = vmatpush.msra.mxu0 0.0
        %550 = vmatpush.msra.mxu0 0.0
        %551 = vmatpush.msra.mxu0 0.0
        %552 = vmatpush.msra.mxu0 0.0
        %553 = vmatpush.msra.mxu0 0.0
        %554 = vmatpush.msra.mxu0 0.0
        %555 = vmatpush.msra.mxu0 0.0
        %556 = vmatpush.msra.mxu0 0.0
        %557 = vmatpush.msra.mxu0 0.0
        %558 = vmatpush.msra.mxu0 0.0
        %559 = vmatpush.msra.mxu0 0.0
        %560 = vmatpush.msra.mxu0 1.0
        %561 = vmatpush.msra.mxu0 %v541
        %562 = vmatpush.msra.mxu0 %v537
        %563 = vmatpush.msra.mxu0 %v533
        %564 = vmatpush.msra.mxu0 %v529
        %565 = vmatmul.f32.gmra.mxu0 %v547
        %v566 = vpop.f32.mrf.mxu0
        %v567 = vadd.f32 0.0, %v566
        %568 = vdwg.mxu0
        %569 = vmatpush.msra.mxu0 0.0
        %570 = vmatpush.msra.mxu0 0.0
        %571 = vmatpush.msra.mxu0 0.0
        %572 = vmatpush.msra.mxu0 0.0
        %573 = vmatpush.msra.mxu0 0.0
        %574 = vmatpush.msra.mxu0 0.0
        %575 = vmatpush.msra.mxu0 0.0
        %576 = vmatpush.msra.mxu0 0.0
        %577 = vmatpush.msra.mxu0 0.0
        %578 = vmatpush.msra.mxu0 0.0
        %579 = vmatpush.msra.mxu0 0.0
        %580 = vmatpush.msra.mxu0 1.0
        %581 = vmatpush.msra.mxu0 %v542
        %582 = vmatpush.msra.mxu0 %v538
        %583 = vmatpush.msra.mxu0 %v534
        %584 = vmatpush.msra.mxu0 %v530
        %585 = vmatmul.f32.gmra.mxu0 %v547
        %v586 = vpop.f32.mrf.mxu0
        %v587 = vadd.f32 0.0, %v586
        %588 = vdwg.mxu0
        %589 = vmatpush.msra.mxu0 0.0
        %590 = vmatpush.msra.mxu0 0.0
        %591 = vmatpush.msra.mxu0 0.0
        %592 = vmatpush.msra.mxu0 0.0
        %593 = vmatpush.msra.mxu0 0.0
        %594 = vmatpush.msra.mxu0 0.0
        %595 = vmatpush.msra.mxu0 0.0
        %596 = vmatpush.msra.mxu0 0.0
        %597 = vmatpush.msra.mxu0 0.0
        %598 = vmatpush.msra.mxu0 0.0
        %599 = vmatpush.msra.mxu0 0.0
        %600 = vmatpush.msra.mxu0 1.0
        %601 = vmatpush.msra.mxu0 %v543
        %602 = vmatpush.msra.mxu0 %v539
        %603 = vmatpush.msra.mxu0 %v535
        %604 = vmatpush.msra.mxu0 %v531
        %605 = vmatmul.f32.gmra.mxu0 %v547
        %v606 = vpop.f32.mrf.mxu0
        %v607 = vadd.f32 0.0, %v606
        %608 = vdwg.mxu0
        %609 = vmatpush.msra.mxu0 0.0
        %610 = vmatpush.msra.mxu0 0.0
        %611 = vmatpush.msra.mxu0 0.0
        %612 = vmatpush.msra.mxu0 0.0
        %613 = vmatpush.msra.mxu0 0.0
        %614 = vmatpush.msra.mxu0 0.0
        %615 = vmatpush.msra.mxu0 0.0
        %616 = vmatpush.msra.mxu0 0.0
        %617 = vmatpush.msra.mxu0 0.0
        %618 = vmatpush.msra.mxu0 0.0
        %619 = vmatpush.msra.mxu0 0.0
        %620 = vmatpush.msra.mxu0 1.0
        %621 = vmatpush.msra.mxu0 %v544
        %622 = vmatpush.msra.mxu0 %v540
        %623 = vmatpush.msra.mxu0 %v536
        %624 = vmatpush.msra.mxu0 %v532
        %625 = vmatmul.f32.gmra.mxu0 %v547
        %v626 = vpop.f32.mrf.mxu0
        %v627 = vadd.f32 0.0, %v626
        %628 = vdwg.mxu0
        %v633 = vrot.slane %v587, 6
        %v634 = vrot.slane %v607, 4
        %v635 = vrot.slane %v627, 2
        %vm636 = vcmask 1041408
        %v637 = vsel %vm636, %v567, %v633
        %vm638 = vcmask 1045508
        %v639 = vsel %vm638, %v634, %v635
        %vm640 = vcmask 1043456
        %v641 = vsel %vm640, %v637, %v639
        %643 = vst [vmem:[%s218] sm:$0xff] %v641
        %s644 = sand.u32 %s137, 1
        %s645 = scalar_lea.sflag [#allocation3], %s644
        %s646 = sand.u32 %s137, 1
        %s647 = smul.addr %s646, 8
        %s648 = scalar_lea.vmem [#allocation2], %s647
        // Predicated region
        $region41: #{tpu_custom_call.1} parent=39 // pred_check
          %p649 = pneg %p147
        $region42: #{tpu_custom_call.1} parent=39 // pred_check_branch
          %651 = sbr.rel (%p649) target = $region44
        $region43: #{tpu_custom_call.1} parent=39 // pred_region
          %s652 = smul.u32 4, %s19
          %654 = vsyncadd %s645, 0
          %s655 = smul.addr %s652, 2
          %s656 = scalar_lea.hbm %s5, %s655
          %s658 = sshll.u32 %s648, 4
          %s659 = int_to_ptr.vmem [resolvable:$true] %s658
          %s660 = sshll.u32 %s656, 4
          %s661 = int_to_ptr.hbm [resolvable:$true] %s660
          %663 = dma.vmem_to_hbm [thread:$0]  %s659, 128, %s661, %s645
        $region44: #{tpu_custom_call.1} parent=39 // pred_fallthru
          _
      $region40: #{tpu_custom_call.1} parent=5 // pred_fallthru
        _
      %p664 = scmp.le.s32.totalorder 2, %s14
      // Predicated region
      $region45: #{tpu_custom_call.1} parent=5 // pred_check
        %p665 = pneg %p664
      $region46: #{tpu_custom_call.1} parent=5 // pred_check_branch
        %667 = sbr.rel (%p665) target = $region48
      $region47: #{tpu_custom_call.1} parent=5 // pred_region
        %s668 = ssub.s32 %s14, 2
        // Predicated region
        $region49: #{tpu_custom_call.1} parent=47 // pred_check
          %p669 = pneg %p153
        $region50: #{tpu_custom_call.1} parent=47 // pred_check_branch
          %671 = sbr.rel (%p669) target = $region52
        $region51: #{tpu_custom_call.1} parent=47 // pred_region
          %s672 = sand.u32 %s138, 1
          %s673 = scalar_lea.sflag [#allocation3], %s672
          %s674 = sand.u32 %s138, 1
          %s675 = smul.addr %s674, 8
          %s676 = scalar_lea.vmem [#allocation2], %s675
          %678 = dma.done %s673, 128
        $region52: #{tpu_custom_call.1} parent=47 // pred_fallthru
          _
      $region48: #{tpu_custom_call.1} parent=5 // pred_fallthru
        _
    $region6: #{tpu_custom_call.1} parent=1 // loop_footer
      %s18 = sadd.s32 1, %s14
    $region7: #{tpu_custom_call.1} parent=1 // loop_footer_branch
      %13 = sbr.rel target = $region3
    $region8: #{tpu_custom_call.1} parent=1 // loop_exit
      _
    %679 = vsyncpa [#allocation3], 1
    %s680 = scalar_lea.sflag [#allocation3], 1
    %681 = vsyncpa %s680, 1

</llo_original>
